<compile_context>
chip_gen: v7x
topology: tpu7x:2x2x1
jax: 0.10.0
libtpu: 0.0.40
codegen_flags: <defaults>
</compile_context>

<pallas_src>
import jax
import jax.numpy as jnp
import numpy as np
from jax.experimental import pallas as pl
from jax.experimental.pallas import tpu as pltpu


def _drop_path_kernel(s_ref, x_ref, o_ref):
    # s_ref : (BT, 1)  per-sample scale = keep / keep_prob (0.0 or 1/keep_prob)
    # x_ref : (BT, NT) flattened activations
    # Multiply in the input dtype (bf16 VPU on v6e/v7x halves vreg/slot
    # traffic; f32 inputs stay f32, which is also the v5e-safe path).
    x = x_ref[...]
    o_ref[...] = (x * s_ref[...].astype(x.dtype)).astype(o_ref.dtype)


def _choose_tiles(b, n_pad, itemsize, block_byte_cap=3 << 20):
    """Pick (batch_tile, feature_tile); n_pad must be a multiple of 128."""
    # Sublane packing multiple depends on dtype width.
    sub = {4: 8, 2: 16, 1: 32}.get(itemsize, 8)

    # Batch tile: full batch by default (always a legal block extent).  Only
    # shrink it (to a multiple of `sub` dividing b) if even a single 128-lane
    # column would blow the per-block byte cap.
    bt = b
    if b % sub == 0 and bt * 128 * itemsize > block_byte_cap:
        cand = (block_byte_cap // (128 * itemsize)) // sub * sub
        cand = max(cand, sub)
        while cand > sub and b % cand != 0:
            cand -= sub
        if b % cand == 0:
            bt = cand

    # Feature tile: largest multiple of 128 that divides n_pad and fits the
    # byte cap (not just a power of two) -> fewest grid steps.
    m = n_pad // 128
    max_d = max(1, min(m, block_byte_cap // (bt * 128 * itemsize)))
    d = max_d
    while m % d != 0:
        d -= 1
    nt = 128 * d

    # Give v7x's two TensorCores work when there is a single *large* block;
    # never split tiny blocks (pure step overhead on single-TC chips).
    steps = (b // bt) * (n_pad // nt)
    if steps == 1 and bt * nt * itemsize >= (512 << 10):
        if (nt // 128) % 2 == 0:
            nt //= 2
        elif bt % (2 * sub) == 0:
            bt //= 2
    return bt, nt


def drop_path_forward(x, drop_prob=0.0, training=False, key=None):
    """Pallas DropPath forward. Identity in eval mode or when drop_prob == 0."""
    if drop_prob == 0.0 or not training:
        return x
    if key is None:
        key = jax.random.PRNGKey(0)
    keep_prob = 1.0 - float(drop_prob)

    b = int(x.shape[0])
    n = 1
    for d in x.shape[1:]:
        n *= int(d)
    x_flat = x.reshape(b, n)

    # Per-sample keep decision folded into a scale: 0.0 or 1/keep_prob.
    u = jax.random.uniform(key, (b, 1), jnp.float32)
    scale = jnp.floor(keep_prob + u) / keep_prob          # (B, 1) f32

    # Pad features up to a multiple of 128 so all blocks are lane-dense.
    n_pad = ((n + 127) // 128) * 128
    if n_pad != n:
        x_flat = jnp.pad(x_flat, ((0, 0), (0, n_pad - n)))

    itemsize = jnp.dtype(x.dtype).itemsize
    bt, nt = _choose_tiles(b, n_pad, itemsize)
    grid = (b // bt, n_pad // nt)

    out_flat = pl.pallas_call(
        _drop_path_kernel,
        out_shape=jax.ShapeDtypeStruct((b, n_pad), x.dtype),
        grid=grid,
        in_specs=[
            pl.BlockSpec((bt, 1), lambda i, j: (i, 0)),    # per-sample scales
            pl.BlockSpec((bt, nt), lambda i, j: (i, j)),   # activations
        ],
        out_specs=pl.BlockSpec((bt, nt), lambda i, j: (i, j)),
        compiler_params=pltpu.CompilerParams(
            dimension_semantics=("parallel", "parallel")),
        cost_estimate=pl.CostEstimate(
            flops=b * n_pad,
            transcendentals=0,
            bytes_accessed=2 * b * n_pad * itemsize),
    )(scale, x_flat)

    if n_pad != n:
        out_flat = out_flat[:, :n]
    return out_flat.reshape(x.shape)


def drop_path_reference(x, u, drop_prob, training):
    """Pure-JAX reference of torch drop_path_f given the same uniform draws."""
    if drop_prob == 0.0 or not training:
        return x
    keep_prob = 1.0 - drop_prob
    shape = (x.shape[0],) + (1,) * (x.ndim - 1)
    random_tensor = jnp.floor(keep_prob + u.reshape(shape))
    return x / keep_prob * random_tensor


if __name__ == "__main__":
    key = jax.random.PRNGKey(0)
    kx, ku1, kx2, ku2, kx3, ku3 = jax.random.split(key, 6)

    # ---- case 1: small shape from the module spec, training mode ----
    b, c, h, w = 2, 4, 16, 16
    drop_prob = 0.25
    x = jax.random.normal(kx, (b, c, h, w), jnp.float32)

    out = drop_path_forward(x, drop_prob=drop_prob, training=True, key=ku1)
    out = jax.block_until_ready(out)

    u1 = jax.random.uniform(ku1, (b, 1), jnp.float32)        # same draws as wrapper
    ref = drop_path_reference(x, u1, drop_prob, training=True)
    np.testing.assert_allclose(np.asarray(out), np.asarray(ref), rtol=1e-6, atol=1e-6)
    assert out.shape == x.shape

    # ---- case 2: batch divisible by 8 exercises multi-row batch tiles ----
    b2 = 16
    x2 = jax.random.normal(kx2, (b2, c, h, w), jnp.float32)
    out2 = drop_path_forward(x2, drop_prob=0.5, training=True, key=ku2)
    out2 = jax.block_until_ready(out2)
    u2 = jax.random.uniform(ku2, (b2, 1), jnp.float32)
    ref2 = drop_path_reference(x2, u2, 0.5, training=True)
    np.testing.assert_allclose(np.asarray(out2), np.asarray(ref2), rtol=1e-6, atol=1e-6)

    # ---- case 3: feature count not a multiple of 128 exercises the pad path ----
    x3 = jax.random.normal(kx3, (2, 3, 7, 5), jnp.float32)   # N = 105 -> padded to 128
    out3 = drop_path_forward(x3, drop_prob=0.25, training=True, key=ku3)
    out3 = jax.block_until_ready(out3)
    u3 = jax.random.uniform(ku3, (2, 1), jnp.float32)
    ref3 = drop_path_reference(x3, u3, 0.25, training=True)
    np.testing.assert_allclose(np.asarray(out3), np.asarray(ref3), rtol=1e-6, atol=1e-6)

    # ---- case 4: eval mode / drop_prob == 0 are exact identity ----
    out_eval = drop_path_forward(x, drop_prob=drop_prob, training=False)
    np.testing.assert_array_equal(np.asarray(out_eval), np.asarray(x))
    out_zero = drop_path_forward(x, drop_prob=0.0, training=True)
    np.testing.assert_array_equal(np.asarray(out_zero), np.asarray(x))

    print("KERNEL_OK")
</pallas_src>

<mosaic_0001>
module attributes {stable_mosaic.version = 11 : i64} {
  func.func @_drop_path_kernel(%arg0: i32, %arg1: i32, %arg2: memref<2x1xf32, #tpu.memory_space<vmem>>, %arg3: memref<2x1024xf32, #tpu.memory_space<vmem>>, %arg4: memref<2x1024xf32, #tpu.memory_space<vmem>>) attributes {dimension_semantics = [#tpu.dimension_semantics<parallel>, #tpu.dimension_semantics<parallel>], iteration_bounds = array<i64: 1, 1>, scalar_prefetch = 0 : i64, scratch_operands = 0 : i64, tpu.core_type = #tpu.core_type<tc>, window_params = [{transform_indices = @transform_0, window_bounds = array<i64: 2, 1>}, {transform_indices = @transform_1, window_bounds = array<i64: 2, 1024>}, {transform_indices = @transform_2, window_bounds = array<i64: 2, 1024>}]} {
    %c0 = arith.constant 0 : index
    %c0_0 = arith.constant 0 : index
    %0 = vector.load %arg3[%c0, %c0_0] : memref<2x1024xf32, #tpu.memory_space<vmem>>, vector<2x1024xf32>
    %c0_1 = arith.constant 0 : index
    %c0_2 = arith.constant 0 : index
    %1 = vector.load %arg2[%c0_1, %c0_2] : memref<2x1xf32, #tpu.memory_space<vmem>>, vector<2x1xf32>
    %2 = vector.broadcast %1 : vector<2x1xf32> to vector<2x1024xf32>
    %3 = arith.mulf %0, %2 : vector<2x1024xf32>
    %c0_3 = arith.constant 0 : index
    %c0_4 = arith.constant 0 : index
    %4 = vector.load %arg4[%c0_3, %c0_4] : memref<2x1024xf32, #tpu.memory_space<vmem>>, vector<2x1024xf32>
    tpu.vector_store %arg4[%c0_3, %c0_4], %3 {strides = array<i32>} : memref<2x1024xf32, #tpu.memory_space<vmem>>, vector<2x1024xf32>,
    return
  }
  func.func @transform_0(%arg0: i32, %arg1: i32) -> (i32, i32) {
    %c0_i32 = arith.constant 0 : i32
    %c0_i32_0 = arith.constant 0 : i32
    return %arg0, %c0_i32 : i32, i32
  }
  func.func @transform_1(%arg0: i32, %arg1: i32) -> (i32, i32) {
    %c0_i32 = arith.constant 0 : i32
    return %arg0, %arg1 : i32, i32
  }
  func.func @transform_2(%arg0: i32, %arg1: i32) -> (i32, i32) {
    %c0_i32 = arith.constant 0 : i32
    return %arg0, %arg1 : i32, i32
  }
}

</mosaic_0001>

<llo_original>
// kernel: tpu_custom_call.1
$region0: #{tpu_custom_call.1}
  #allocation0 [shape = 'u32[]', space=smem, size = 0x4, offset = 0x4, fixed_abs, tag = 'smem constant byte address 0x4 - core index']
  #allocation1 [shape = 'u32[144,128]{1,0:T(1,128)}', space=vmem, size = 0x12000, scoped, tag = 'internal scratch']
  %s0 = inlined_call_operand.vmem [shape: f32[2,1], index: 0, kind: input, shape index: {}]
  %s1 = inlined_call_operand.hbm [shape: f32[2,1024], index: 1, kind: input, shape index: {}]
  %s2 = inlined_call_operand.hbm [shape: f32[2,1024], index: 2, kind: output, shape index: {}]
  %s3 = sld [smem:[#allocation0]]
  $region22: #{tpu_custom_call.1} parent=0
    _
  %s5 = ssub.s32 1, %s3
  %s6 = scalar_select 0, %s5, %s3
  $region1: #{tpu_custom_call.1} parent=0
    #allocation2 [shape = 'u8[8192]{0}', space=vmem, size = 0x2000, scoped, tag = 'input window, operand 1, single buffered']
    #allocation3 [shape = 's32[1]{0}', space=sflag, size = 0x4, scoped, tag = 'scoped memory for tpu_custom_call.1']
    #allocation4 [shape = 's32[1]{0}', space=sflag, size = 0x4, scoped, tag = 'scoped memory for tpu_custom_call.1']
    #allocation5 [shape = 'u8[8192]{0}', space=vmem, size = 0x2000, scoped, tag = 'output window, operand 0, single buffered']
    %7 = vsyncpa [#allocation3], 0
    %8 = vsyncpa [#allocation4], 0
    // Predicated region
    $region2: #{tpu_custom_call.1} parent=1 // pred_check
      _
    $region3: #{tpu_custom_call.1} parent=1 // pred_check_branch
      %10 = sbr.rel (0) target = $region5
    $region4: #{tpu_custom_call.1} parent=1 // pred_region
      _
    $region5: #{tpu_custom_call.1} parent=1 // pred_fallthru
      _
    // Predicated region
    $region6: #{tpu_custom_call.1} parent=1 // pred_check
      _
    $region7: #{tpu_custom_call.1} parent=1 // pred_check_branch
      %12 = sbr.rel (0) target = $region9
    $region8: #{tpu_custom_call.1} parent=1 // pred_region
      %s14 = ssub.s32 256, 256
      %15 = vsyncadd [#allocation3], %s14
      %s17 = sshll.u32 [#allocation2], 4
      %s18 = int_to_ptr.vmem [resolvable:$true] %s17
      %20 = dma.hbm_to_vmem [thread:$0]  %s1, 256, %s18, [#allocation3]
    $region9: #{tpu_custom_call.1} parent=1 // pred_fallthru
      _
    // Predicated region
    $region10: #{tpu_custom_call.1} parent=1 // pred_check
      _
    $region11: #{tpu_custom_call.1} parent=1 // pred_check_branch
      %22 = sbr.rel (0) target = $region13
    $region12: #{tpu_custom_call.1} parent=1 // pred_region
      %23 = dma.done [#allocation3], 256
    $region13: #{tpu_custom_call.1} parent=1 // pred_fallthru
      _
    %v24 = vld [vmem:[#allocation2] sm:$0xff]
    %v25 = vld [vmem:[#allocation2 + $0x8] sm:$0xff]
    %v26 = vld [vmem:[%s0] sm:$0x3]
    %28 = vset.pattern.permute.xlu0 0
    %29 = vperm.xlu0 %28, %v26
    %v30 = vpop.permute.xlu0 %29
    %v32 = vunpack.c.l.s4 269488144
    %v33 = vunpack.c.0.s8 %v32
    %v34 = vlaneseq
    %v35 = vshrl.u32 %v34, 7
    %v36 = vsub.s32 %v33, %v35
    %v37 = vrot.slane %v30, %v36
    %v39 = vmul.f32 %v24, %v37
    %v40 = vmul.f32 %v25, %v37
    %41 = vst [vmem:[#allocation5] sm:$0xff] %v39
    %42 = vst [vmem:[#allocation5 + $0x8] sm:$0xff] %v40
    // Predicated region
    $region14: #{tpu_custom_call.1} parent=1 // pred_check
      _
    $region15: #{tpu_custom_call.1} parent=1 // pred_check_branch
      %44 = sbr.rel (0) target = $region17
    $region16: #{tpu_custom_call.1} parent=1 // pred_region
      %s46 = ssub.s32 256, 256
      %47 = vsyncadd [#allocation4], %s46
      %s49 = sshll.u32 [#allocation5], 4
      %s50 = int_to_ptr.vmem [resolvable:$true] %s49
      %52 = dma.vmem_to_hbm [thread:$0]  %s50, 256, %s2, [#allocation4]
    $region17: #{tpu_custom_call.1} parent=1 // pred_fallthru
      _
    // Predicated region
    $region18: #{tpu_custom_call.1} parent=1 // pred_check
      _
    $region19: #{tpu_custom_call.1} parent=1 // pred_check_branch
      %54 = sbr.rel (0) target = $region21
    $region20: #{tpu_custom_call.1} parent=1 // pred_region
      %55 = dma.done [#allocation4], 256
    $region21: #{tpu_custom_call.1} parent=1 // pred_fallthru
      _
    %56 = vsyncpa [#allocation3], 1
    %57 = vsyncpa [#allocation4], 1

</llo_original>
